<compile_context>
chip_gen: v7x
topology: tpu7x:2x2x1
jax: 0.10.0
libtpu: 0.0.40
codegen_flags: <defaults>
</compile_context>

<pallas_src>
import functools
import math

import jax
import jax.numpy as jnp
from jax.experimental import pallas as pl
from jax.experimental.pallas import tpu as pltpu


def _round_up(n, m):
    return (n + m - 1) // m * m


# ----------------------------- Pallas kernel -----------------------------

def _hdc_fused_kernel(*refs, layers_per_block, num_block):
    """Fused HDC cascade for one batch tile.

    refs = (x_ref, w0, b0, w1, b1, ..., out_ref) where the (w, b) pairs run
    over every Linear of every block's MLP followed by that block's embedder.
    """
    x_ref = refs[0]
    out_ref = refs[-1]
    wb = refs[1:-1]

    h = x_ref[...].astype(jnp.float32)                 # (tb, D) activations, f32
    acc = jnp.zeros((h.shape[0], 1), jnp.float32)      # running sum of block sigmoids
    inv_nb = jnp.float32(1.0 / num_block)

    idx = 0
    for n_layers in layers_per_block:
        # ---- MLP: (Linear -> LeakyReLU(0.01) -> Dropout(identity)) x n_layers
        for _ in range(n_layers):
            w = wb[idx][...]                           # (Din, Dout), bf16
            b = wb[idx + 1][...].astype(jnp.float32)   # (1, Dout)
            idx += 2
            y = jnp.dot(h.astype(w.dtype), w,
                        preferred_element_type=jnp.float32) + b
            h = jnp.where(y >= 0, y, jnp.float32(0.01) * y)   # nn.LeakyReLU default
        # ---- embedder: Linear(out_dim, 1) -> sigmoid
        we = wb[idx][...]                              # (Dout, 1)
        be = wb[idx + 1][...].astype(jnp.float32)      # (1, 1)
        idx += 2
        logit = jnp.dot(h.astype(we.dtype), we,
                        preferred_element_type=jnp.float32) + be
        # numerically stable sigmoid via tanh (EUP op, no exp(-y) overflow)
        acc = acc + 0.5 * (jnp.tanh(0.5 * logit) + 1.0)

    # TODO(synk): `self.ensemble.predict(out_list)` (give_ensembler for MSELoss)
    # is not provided; use the mean of the per-block sigmoid outputs.
    out_ref[...] = (acc * inv_nb).astype(out_ref.dtype)


# ------------------------------ forward pass ------------------------------

def combined_hdc_forward(feature, params, *, tb_max=256):
    """feature: (B, output_dim) float32 -> (B,) ensembled prediction.

    One fused pallas_call over a batch-tiled grid; all block weights resident
    in VMEM with constant index_maps.
    """
    B, D = feature.shape
    num_block = len(params)

    # Flatten all (w, b) pairs in cascade order: block0 mlp..., block0 emb, ...
    flat = []
    layers_per_block = []
    for blk in params:
        layers_per_block.append(len(blk["mlp"]))
        for (w, b) in blk["mlp"]:
            flat.append(w)
            flat.append(b)
        flat.append(blk["emb"][0])
        flat.append(blk["emb"][1])

    # Batch tiling: large tiles, but keep >= 2 grid steps when the batch allows
    # so both v7x TensorCores get work; pad the batch to a tile multiple.
    Bp8 = _round_up(B, 8)
    if Bp8 >= 16:
        tb = min(tb_max, _round_up(pl.cdiv(Bp8, 2), 8))
    else:
        tb = Bp8
    Bp = _round_up(B, tb)
    x = feature if Bp == B else jnp.pad(feature, ((0, Bp - B), (0, 0)))
    grid = (Bp // tb,)

    # VMEM budget: weights (double-buffered) + a few activation-sized temps.
    # TODO(synk): at realistic backbone widths on v7x (64 MiB VMEM), pipeline
    # weights per block instead of keeping the whole cascade resident.
    weight_bytes = sum(int(a.size) * a.dtype.itemsize for a in flat)
    max_w = max(max(a.shape) for a in flat)
    act_bytes = 8 * tb * max_w * 4
    io_bytes = 2 * (tb * D + tb) * 4
    vmem_limit = max(2 * weight_bytes + act_bytes + io_bytes + (4 << 20), 32 << 20)
    vmem_limit = min(vmem_limit, 48 << 20)   # stay well under v7x's 64 MiB/TC

    in_specs = [pl.BlockSpec((tb, D), lambda i: (i, 0))]
    for a in flat:
        in_specs.append(pl.BlockSpec(a.shape, lambda i: (0, 0)))
    out_spec = pl.BlockSpec((tb, 1), lambda i: (i, 0))

    out = pl.pallas_call(
        functools.partial(_hdc_fused_kernel,
                          layers_per_block=tuple(layers_per_block),
                          num_block=num_block),
        out_shape=jax.ShapeDtypeStruct((Bp, 1), jnp.float32),
        grid_spec=pltpu.PrefetchScalarGridSpec(
            num_scalar_prefetch=0,
            grid=grid,
            in_specs=in_specs,
            out_specs=out_spec,
        ),
        compiler_params=pltpu.CompilerParams(
            dimension_semantics=("parallel",),
            vmem_limit_bytes=int(vmem_limit),
        ),
    )(x, *flat)

    return out[:B, 0]


# --------------------------- parameter building ---------------------------

def _kaiming_normal(key, shape, fan_in, a=math.sqrt(5)):
    # Matches init.kaiming_normal_(w, a=sqrt(5)) (leaky_relu gain, fan_in mode).
    gain = math.sqrt(2.0 / (1.0 + a * a))
    std = gain / math.sqrt(fan_in)
    return std * jax.random.normal(key, shape, dtype=jnp.float32)


def build_params(key, output_dim, num_block, num_layer, growth_rate,
                 weight_dtype=jnp.bfloat16):
    """Deterministic params for the HDC cascade (biases zero, kaiming weights).

    Weights stored (in_dim, out_dim) so the kernel computes y = x @ W + b
    (equivalent to PyTorch's x @ W.T + b with W stored (out, in)).
    """
    params = []
    in_dim = output_dim
    for _ in range(num_block):
        hid_dim = in_dim * growth_rate
        out_dim = in_dim
        size_list = [in_dim] + [hid_dim] * (num_layer - 1) + [out_dim]
        mlp = []
        for j in range(len(size_list) - 1):
            key, wk = jax.random.split(key)
            w = _kaiming_normal(wk, (size_list[j], size_list[j + 1]),
                                fan_in=size_list[j]).astype(weight_dtype)
            b = jnp.zeros((1, size_list[j + 1]), jnp.float32)
            mlp.append((w, b))
        key, ek = jax.random.split(key)
        we = _kaiming_normal(ek, (out_dim, 1), fan_in=out_dim).astype(weight_dtype)
        be = jnp.zeros((1, 1), jnp.float32)
        params.append({"mlp": mlp, "emb": (we, be)})
        in_dim = out_dim
    return params


# ------------------------- pure-JAX reference path -------------------------

def _reference_forward(feature, params):
    h = feature.astype(jnp.float32)
    outs = []
    for blk in params:
        for (w, b) in blk["mlp"]:
            y = h @ w.astype(jnp.float32) + b
            h = jnp.where(y >= 0, y, 0.01 * y)
        we, be = blk["emb"]
        logit = h @ we.astype(jnp.float32) + be
        outs.append(jax.nn.sigmoid(logit)[:, 0])
    return jnp.mean(jnp.stack(outs, axis=0), axis=0)


# ---------------------------------- main ----------------------------------

if __name__ == "__main__":
    # Small config consistent with CombinedHDC.__init__:
    batch = 16             # -> grid (2,) so both v7x TensorCores get a tile
    output_dim = 32        # feature dim coming out of the handler
    num_block = 2
    num_layer = 2          # size_list per block = [32, 64, 32]
    growth_rate = 2

    key = jax.random.PRNGKey(0)
    key, fkey, pkey = jax.random.split(key, 3)

    # Synthetic backbone feature (pretrained transformer + handler not modeled).
    feature = jax.random.normal(fkey, (batch, output_dim), dtype=jnp.float32)
    params = build_params(pkey, output_dim, num_block, num_layer, growth_rate)

    out = combined_hdc_forward(feature, params)
    out = jax.block_until_ready(out)
    assert out.shape == (batch,)

    ref = jax.block_until_ready(_reference_forward(feature, params))
    assert bool(jnp.all(jnp.isfinite(out)))
    assert bool(jnp.allclose(out, ref, atol=5e-2, rtol=5e-2))

    print("KERNEL_OK")
</pallas_src>

<mosaic_0001>
module attributes {stable_mosaic.version = 11 : i64} {
  func.func @_hdc_fused_kernel(%arg0: i32, %arg1: memref<8x32xf32, #tpu.memory_space<vmem>>, %arg2: memref<32x64xbf16, #tpu.memory_space<vmem>>, %arg3: memref<1x64xf32, #tpu.memory_space<vmem>>, %arg4: memref<64x32xbf16, #tpu.memory_space<vmem>>, %arg5: memref<1x32xf32, #tpu.memory_space<vmem>>, %arg6: memref<32x1xbf16, #tpu.memory_space<vmem>>, %arg7: memref<1x1xf32, #tpu.memory_space<vmem>>, %arg8: memref<32x64xbf16, #tpu.memory_space<vmem>>, %arg9: memref<1x64xf32, #tpu.memory_space<vmem>>, %arg10: memref<64x32xbf16, #tpu.memory_space<vmem>>, %arg11: memref<1x32xf32, #tpu.memory_space<vmem>>, %arg12: memref<32x1xbf16, #tpu.memory_space<vmem>>, %arg13: memref<1x1xf32, #tpu.memory_space<vmem>>, %arg14: memref<8x1xf32, #tpu.memory_space<vmem>>) attributes {dimension_semantics = [#tpu.dimension_semantics<parallel>], iteration_bounds = array<i64: 2>, scalar_prefetch = 0 : i64, scratch_operands = 0 : i64, tpu.core_type = #tpu.core_type<tc>, window_params = [{transform_indices = @transform_0, window_bounds = array<i64: 8, 32>}, {pipeline_mode = #tpu.pipeline_mode<synchronous>, transform_indices = @transform_1, window_bounds = array<i64: 32, 64>}, {pipeline_mode = #tpu.pipeline_mode<synchronous>, transform_indices = @transform_2, window_bounds = array<i64: 1, 64>}, {pipeline_mode = #tpu.pipeline_mode<synchronous>, transform_indices = @transform_3, window_bounds = array<i64: 64, 32>}, {pipeline_mode = #tpu.pipeline_mode<synchronous>, transform_indices = @transform_4, window_bounds = array<i64: 1, 32>}, {pipeline_mode = #tpu.pipeline_mode<synchronous>, transform_indices = @transform_5, window_bounds = array<i64: 32, 1>}, {pipeline_mode = #tpu.pipeline_mode<synchronous>, transform_indices = @transform_6, window_bounds = array<i64: 1, 1>}, {pipeline_mode = #tpu.pipeline_mode<synchronous>, transform_indices = @transform_7, window_bounds = array<i64: 32, 64>}, {pipeline_mode = #tpu.pipeline_mode<synchronous>, transform_indices = @transform_8, window_bounds = array<i64: 1, 64>}, {pipeline_mode = #tpu.pipeline_mode<synchronous>, transform_indices = @transform_9, window_bounds = array<i64: 64, 32>}, {pipeline_mode = #tpu.pipeline_mode<synchronous>, transform_indices = @transform_10, window_bounds = array<i64: 1, 32>}, {pipeline_mode = #tpu.pipeline_mode<synchronous>, transform_indices = @transform_11, window_bounds = array<i64: 32, 1>}, {pipeline_mode = #tpu.pipeline_mode<synchronous>, transform_indices = @transform_12, window_bounds = array<i64: 1, 1>}, {transform_indices = @transform_13, window_bounds = array<i64: 8, 1>}]} {
    %c0 = arith.constant 0 : index
    %c0_0 = arith.constant 0 : index
    %0 = vector.load %arg1[%c0, %c0_0] : memref<8x32xf32, #tpu.memory_space<vmem>>, vector<8x32xf32>
    %cst = arith.constant 0.000000e+00 : f32
    %1 = vector.broadcast %cst : f32 to vector<8x1xf32>
    %c0_1 = arith.constant 0 : index
    %c0_2 = arith.constant 0 : index
    %2 = vector.load %arg2[%c0_1, %c0_2] : memref<32x64xbf16, #tpu.memory_space<vmem>>, vector<32x64xbf16>
    %c0_3 = arith.constant 0 : index
    %c0_4 = arith.constant 0 : index
    %3 = vector.load %arg3[%c0_3, %c0_4] : memref<1x64xf32, #tpu.memory_space<vmem>>, vector<1x64xf32>
    %4 = arith.truncf %0 : vector<8x32xf32> to vector<8x32xbf16>
    %cst_5 = arith.constant dense<0.000000e+00> : vector<8x64xf32>
    %5 = tpu.matmul %4, %2, %cst_5 {dimension_numbers = #tpu.dot_dimension_numbers<[1], [0], [0], [1], [0, 0, 1, 1], [], []>} : vector<8x32xbf16>, vector<32x64xbf16>, vector<8x64xf32> -> vector<8x64xf32>
    %6 = vector.broadcast %3 : vector<1x64xf32> to vector<8x64xf32>
    %7 = arith.addf %5, %6 : vector<8x64xf32>
    %cst_6 = arith.constant 0.000000e+00 : f32
    %8 = vector.broadcast %cst_6 : f32 to vector<8x64xf32>
    %9 = arith.cmpf oge, %7, %8 : vector<8x64xf32>
    %cst_7 = arith.constant 0.00999999977 : f32
    %10 = vector.broadcast %cst_7 : f32 to vector<8x64xf32>
    %11 = arith.mulf %10, %7 : vector<8x64xf32>
    %12 = arith.select %9, %7, %11 : vector<8x64xi1>, vector<8x64xf32>
    %c0_8 = arith.constant 0 : index
    %c0_9 = arith.constant 0 : index
    %13 = vector.load %arg4[%c0_8, %c0_9] : memref<64x32xbf16, #tpu.memory_space<vmem>>, vector<64x32xbf16>
    %c0_10 = arith.constant 0 : index
    %c0_11 = arith.constant 0 : index
    %14 = vector.load %arg5[%c0_10, %c0_11] : memref<1x32xf32, #tpu.memory_space<vmem>>, vector<1x32xf32>
    %15 = arith.truncf %12 : vector<8x64xf32> to vector<8x64xbf16>
    %cst_12 = arith.constant dense<0.000000e+00> : vector<8x32xf32>
    %16 = tpu.matmul %15, %13, %cst_12 {dimension_numbers = #tpu.dot_dimension_numbers<[1], [0], [0], [1], [0, 0, 1, 1], [], []>} : vector<8x64xbf16>, vector<64x32xbf16>, vector<8x32xf32> -> vector<8x32xf32>
    %17 = vector.broadcast %14 : vector<1x32xf32> to vector<8x32xf32>
    %18 = arith.addf %16, %17 : vector<8x32xf32>
    %cst_13 = arith.constant 0.000000e+00 : f32
    %19 = vector.broadcast %cst_13 : f32 to vector<8x32xf32>
    %20 = arith.cmpf oge, %18, %19 : vector<8x32xf32>
    %cst_14 = arith.constant 0.00999999977 : f32
    %21 = vector.broadcast %cst_14 : f32 to vector<8x32xf32>
    %22 = arith.mulf %21, %18 : vector<8x32xf32>
    %23 = arith.select %20, %18, %22 : vector<8x32xi1>, vector<8x32xf32>
    %c0_15 = arith.constant 0 : index
    %c0_16 = arith.constant 0 : index
    %24 = vector.load %arg6[%c0_15, %c0_16] : memref<32x1xbf16, #tpu.memory_space<vmem>>, vector<32x1xbf16>
    %c0_17 = arith.constant 0 : index
    %c0_18 = arith.constant 0 : index
    %25 = vector.load %arg7[%c0_17, %c0_18] : memref<1x1xf32, #tpu.memory_space<vmem>>, vector<1x1xf32>
    %26 = arith.truncf %23 : vector<8x32xf32> to vector<8x32xbf16>
    %cst_19 = arith.constant dense<0.000000e+00> : vector<8x1xf32>
    %27 = tpu.matmul %26, %24, %cst_19 {dimension_numbers = #tpu.dot_dimension_numbers<[1], [0], [0], [1], [0, 0, 1, 1], [], []>} : vector<8x32xbf16>, vector<32x1xbf16>, vector<8x1xf32> -> vector<8x1xf32>
    %28 = vector.broadcast %25 : vector<1x1xf32> to vector<8x1xf32>
    %29 = arith.addf %27, %28 : vector<8x1xf32>
    %cst_20 = arith.constant 5.000000e-01 : f32
    %30 = vector.broadcast %cst_20 : f32 to vector<8x1xf32>
    %31 = arith.mulf %30, %29 : vector<8x1xf32>
    %32 = math.tanh %31 : vector<8x1xf32>
    %cst_21 = arith.constant 1.000000e+00 : f32
    %33 = vector.broadcast %cst_21 : f32 to vector<8x1xf32>
    %34 = arith.addf %32, %33 : vector<8x1xf32>
    %cst_22 = arith.constant 5.000000e-01 : f32
    %35 = vector.broadcast %cst_22 : f32 to vector<8x1xf32>
    %36 = arith.mulf %35, %34 : vector<8x1xf32>
    %37 = arith.addf %1, %36 : vector<8x1xf32>
    %c0_23 = arith.constant 0 : index
    %c0_24 = arith.constant 0 : index
    %38 = vector.load %arg8[%c0_23, %c0_24] : memref<32x64xbf16, #tpu.memory_space<vmem>>, vector<32x64xbf16>
    %c0_25 = arith.constant 0 : index
    %c0_26 = arith.constant 0 : index
    %39 = vector.load %arg9[%c0_25, %c0_26] : memref<1x64xf32, #tpu.memory_space<vmem>>, vector<1x64xf32>
    %40 = arith.truncf %23 : vector<8x32xf32> to vector<8x32xbf16>
    %cst_27 = arith.constant dense<0.000000e+00> : vector<8x64xf32>
    %41 = tpu.matmul %40, %38, %cst_27 {dimension_numbers = #tpu.dot_dimension_numbers<[1], [0], [0], [1], [0, 0, 1, 1], [], []>} : vector<8x32xbf16>, vector<32x64xbf16>, vector<8x64xf32> -> vector<8x64xf32>
    %42 = vector.broadcast %39 : vector<1x64xf32> to vector<8x64xf32>
    %43 = arith.addf %41, %42 : vector<8x64xf32>
    %cst_28 = arith.constant 0.000000e+00 : f32
    %44 = vector.broadcast %cst_28 : f32 to vector<8x64xf32>
    %45 = arith.cmpf oge, %43, %44 : vector<8x64xf32>
    %cst_29 = arith.constant 0.00999999977 : f32
    %46 = vector.broadcast %cst_29 : f32 to vector<8x64xf32>
    %47 = arith.mulf %46, %43 : vector<8x64xf32>
    %48 = arith.select %45, %43, %47 : vector<8x64xi1>, vector<8x64xf32>
    %c0_30 = arith.constant 0 : index
    %c0_31 = arith.constant 0 : index
    %49 = vector.load %arg10[%c0_30, %c0_31] : memref<64x32xbf16, #tpu.memory_space<vmem>>, vector<64x32xbf16>
    %c0_32 = arith.constant 0 : index
    %c0_33 = arith.constant 0 : index
    %50 = vector.load %arg11[%c0_32, %c0_33] : memref<1x32xf32, #tpu.memory_space<vmem>>, vector<1x32xf32>
    %51 = arith.truncf %48 : vector<8x64xf32> to vector<8x64xbf16>
    %cst_34 = arith.constant dense<0.000000e+00> : vector<8x32xf32>
    %52 = tpu.matmul %51, %49, %cst_34 {dimension_numbers = #tpu.dot_dimension_numbers<[1], [0], [0], [1], [0, 0, 1, 1], [], []>} : vector<8x64xbf16>, vector<64x32xbf16>, vector<8x32xf32> -> vector<8x32xf32>
    %53 = vector.broadcast %50 : vector<1x32xf32> to vector<8x32xf32>
    %54 = arith.addf %52, %53 : vector<8x32xf32>
    %cst_35 = arith.constant 0.000000e+00 : f32
    %55 = vector.broadcast %cst_35 : f32 to vector<8x32xf32>
    %56 = arith.cmpf oge, %54, %55 : vector<8x32xf32>
    %cst_36 = arith.constant 0.00999999977 : f32
    %57 = vector.broadcast %cst_36 : f32 to vector<8x32xf32>
    %58 = arith.mulf %57, %54 : vector<8x32xf32>
    %59 = arith.select %56, %54, %58 : vector<8x32xi1>, vector<8x32xf32>
    %c0_37 = arith.constant 0 : index
    %c0_38 = arith.constant 0 : index
    %60 = vector.load %arg12[%c0_37, %c0_38] : memref<32x1xbf16, #tpu.memory_space<vmem>>, vector<32x1xbf16>
    %c0_39 = arith.constant 0 : index
    %c0_40 = arith.constant 0 : index
    %61 = vector.load %arg13[%c0_39, %c0_40] : memref<1x1xf32, #tpu.memory_space<vmem>>, vector<1x1xf32>
    %62 = arith.truncf %59 : vector<8x32xf32> to vector<8x32xbf16>
    %cst_41 = arith.constant dense<0.000000e+00> : vector<8x1xf32>
    %63 = tpu.matmul %62, %60, %cst_41 {dimension_numbers = #tpu.dot_dimension_numbers<[1], [0], [0], [1], [0, 0, 1, 1], [], []>} : vector<8x32xbf16>, vector<32x1xbf16>, vector<8x1xf32> -> vector<8x1xf32>
    %64 = vector.broadcast %61 : vector<1x1xf32> to vector<8x1xf32>
    %65 = arith.addf %63, %64 : vector<8x1xf32>
    %cst_42 = arith.constant 5.000000e-01 : f32
    %66 = vector.broadcast %cst_42 : f32 to vector<8x1xf32>
    %67 = arith.mulf %66, %65 : vector<8x1xf32>
    %68 = math.tanh %67 : vector<8x1xf32>
    %cst_43 = arith.constant 1.000000e+00 : f32
    %69 = vector.broadcast %cst_43 : f32 to vector<8x1xf32>
    %70 = arith.addf %68, %69 : vector<8x1xf32>
    %cst_44 = arith.constant 5.000000e-01 : f32
    %71 = vector.broadcast %cst_44 : f32 to vector<8x1xf32>
    %72 = arith.mulf %71, %70 : vector<8x1xf32>
    %73 = arith.addf %37, %72 : vector<8x1xf32>
    %cst_45 = arith.constant 5.000000e-01 : f32
    %74 = vector.broadcast %cst_45 : f32 to vector<8x1xf32>
    %75 = arith.mulf %73, %74 : vector<8x1xf32>
    %c0_46 = arith.constant 0 : index
    %c0_47 = arith.constant 0 : index
    %76 = vector.load %arg14[%c0_46, %c0_47] : memref<8x1xf32, #tpu.memory_space<vmem>>, vector<8x1xf32>
    tpu.vector_store %arg14[%c0_46, %c0_47], %75 {strides = array<i32>} : memref<8x1xf32, #tpu.memory_space<vmem>>, vector<8x1xf32>,
    return
  }
  func.func @transform_0(%arg0: i32) -> (i32, i32) {
    %c0_i32 = arith.constant 0 : i32
    %c0_i32_0 = arith.constant 0 : i32
    return %arg0, %c0_i32 : i32, i32
  }
  func.func @transform_1(%arg0: i32) -> (i32, i32) {
    %c0_i32 = arith.constant 0 : i32
    %c0_i32_0 = arith.constant 0 : i32
    %c0_i32_1 = arith.constant 0 : i32
    return %c0_i32, %c0_i32_0 : i32, i32
  }
  func.func @transform_2(%arg0: i32) -> (i32, i32) {
    %c0_i32 = arith.constant 0 : i32
    %c0_i32_0 = arith.constant 0 : i32
    %c0_i32_1 = arith.constant 0 : i32
    return %c0_i32, %c0_i32_0 : i32, i32
  }
  func.func @transform_3(%arg0: i32) -> (i32, i32) {
    %c0_i32 = arith.constant 0 : i32
    %c0_i32_0 = arith.constant 0 : i32
    %c0_i32_1 = arith.constant 0 : i32
    return %c0_i32, %c0_i32_0 : i32, i32
  }
  func.func @transform_4(%arg0: i32) -> (i32, i32) {
    %c0_i32 = arith.constant 0 : i32
    %c0_i32_0 = arith.constant 0 : i32
    %c0_i32_1 = arith.constant 0 : i32
    return %c0_i32, %c0_i32_0 : i32, i32
  }
  func.func @transform_5(%arg0: i32) -> (i32, i32) {
    %c0_i32 = arith.constant 0 : i32
    %c0_i32_0 = arith.constant 0 : i32
    %c0_i32_1 = arith.constant 0 : i32
    return %c0_i32, %c0_i32_0 : i32, i32
  }
  func.func @transform_6(%arg0: i32) -> (i32, i32) {
    %c0_i32 = arith.constant 0 : i32
    %c0_i32_0 = arith.constant 0 : i32
    %c0_i32_1 = arith.constant 0 : i32
    return %c0_i32, %c0_i32_0 : i32, i32
  }
  func.func @transform_7(%arg0: i32) -> (i32, i32) {
    %c0_i32 = arith.constant 0 : i32
    %c0_i32_0 = arith.constant 0 : i32
    %c0_i32_1 = arith.constant 0 : i32
    return %c0_i32, %c0_i32_0 : i32, i32
  }
  func.func @transform_8(%arg0: i32) -> (i32, i32) {
    %c0_i32 = arith.constant 0 : i32
    %c0_i32_0 = arith.constant 0 : i32
    %c0_i32_1 = arith.constant 0 : i32
    return %c0_i32, %c0_i32_0 : i32, i32
  }
  func.func @transform_9(%arg0: i32) -> (i32, i32) {
    %c0_i32 = arith.constant 0 : i32
    %c0_i32_0 = arith.constant 0 : i32
    %c0_i32_1 = arith.constant 0 : i32
    return %c0_i32, %c0_i32_0 : i32, i32
  }
  func.func @transform_10(%arg0: i32) -> (i32, i32) {
    %c0_i32 = arith.constant 0 : i32
    %c0_i32_0 = arith.constant 0 : i32
    %c0_i32_1 = arith.constant 0 : i32
    return %c0_i32, %c0_i32_0 : i32, i32
  }
  func.func @transform_11(%arg0: i32) -> (i32, i32) {
    %c0_i32 = arith.constant 0 : i32
    %c0_i32_0 = arith.constant 0 : i32
    %c0_i32_1 = arith.constant 0 : i32
    return %c0_i32, %c0_i32_0 : i32, i32
  }
  func.func @transform_12(%arg0: i32) -> (i32, i32) {
    %c0_i32 = arith.constant 0 : i32
    %c0_i32_0 = arith.constant 0 : i32
    %c0_i32_1 = arith.constant 0 : i32
    return %c0_i32, %c0_i32_0 : i32, i32
  }
  func.func @transform_13(%arg0: i32) -> (i32, i32) {
    %c0_i32 = arith.constant 0 : i32
    %c0_i32_0 = arith.constant 0 : i32
    return %arg0, %c0_i32 : i32, i32
  }
}

</mosaic_0001>

<llo_original>
// kernel: tpu_custom_call.1
$region0: #{tpu_custom_call.1}
  #allocation0 [shape = 'u32[]', space=smem, size = 0x4, offset = 0x4, fixed_abs, tag = 'smem constant byte address 0x4 - core index']
  #allocation1 [shape = 'u32[144,128]{1,0:T(1,128)}', space=vmem, size = 0x12000, scoped, tag = 'internal scratch']
  #allocation2 [shape = 'f32[1,1]{1,0:T(1,128)S(1)}', space=vmem, size = 0x200, scoped, tag = 'scoped memory for tpu_custom_call.1']
  #allocation3 [shape = 'f32[1,1]{1,0:T(1,128)S(1)}', space=vmem, size = 0x200, scoped, tag = 'scoped memory for tpu_custom_call.1']
  %s0 = inlined_call_operand.vmem [shape: f32[16,32], index: 0, kind: input, shape index: {}]
  %s1 = inlined_call_operand.vmem [shape: bf16[32,64], index: 1, kind: input, shape index: {}]
  %s2 = inlined_call_operand.vmem [shape: f32[1,64], index: 2, kind: input, shape index: {}]
  %s3 = inlined_call_operand.vmem [shape: bf16[64,32], index: 3, kind: input, shape index: {}]
  %s4 = inlined_call_operand.vmem [shape: f32[1,32], index: 4, kind: input, shape index: {}]
  %s5 = inlined_call_operand.vmem [shape: bf16[32,1], index: 5, kind: input, shape index: {}]
  %s6 = inlined_call_operand.<no memory space> [shape: f32[1,1], index: 6, kind: input, shape index: {}]
  %s7 = inlined_call_operand.vmem [shape: bf16[32,64], index: 7, kind: input, shape index: {}]
  %s8 = inlined_call_operand.vmem [shape: f32[1,64], index: 8, kind: input, shape index: {}]
  %s9 = inlined_call_operand.vmem [shape: bf16[64,32], index: 9, kind: input, shape index: {}]
  %s10 = inlined_call_operand.vmem [shape: f32[1,32], index: 10, kind: input, shape index: {}]
  %s11 = inlined_call_operand.vmem [shape: bf16[32,1], index: 11, kind: input, shape index: {}]
  %s12 = inlined_call_operand.<no memory space> [shape: f32[1,1], index: 12, kind: input, shape index: {}]
  %s13 = inlined_call_operand.vmem [shape: f32[16,1], index: 13, kind: output, shape index: {}]
  %s14 = sld [smem:[#allocation0]]
  $region85: #{tpu_custom_call.1} parent=0
    _
  %s16 = ssub.s32 1, %s14
  %s17 = scalar_select 0, %s16, %s14
  %v18 = vstv %s6
  %19 = vst [vmem:[#allocation2] sm:$0x1] %v18
  %v20 = vstv %s12
  %21 = vst [vmem:[#allocation3] sm:$0x1] %v20
  loop: start=0, step=1, limit=4
  $region2: #{tpu_custom_call.1} parent=0 // loop_pre_header
    _
  $region3: #{tpu_custom_call.1} parent=0 // loop_header
    %s23 = sphi 0, %s27
    %p24 = scmp.ge.s32.totalorder %s23, 4
    %s33 = sphi 0, %s35
    %s36 = sphi 0, %s33
    %s37 = sphi 0, %s36
    %s53 = sphi 0, %s37
    %s57 = sphi 0, %s57
    %s59 = sphi 0, %s57
    %s60 = sphi 0, %s59
    %s74 = sphi 0, %s60
    %s78 = sphi 0, %s78
    %s80 = sphi 0, %s78
    %s81 = sphi 0, %s80
    %s95 = sphi 0, %s81
    %s99 = sphi 0, %s99
    %s101 = sphi 0, %s99
    %s102 = sphi 0, %s101
    %s116 = sphi 0, %s102
    %s120 = sphi 0, %s120
    %s122 = sphi 0, %s120
    %s123 = sphi 0, %s122
    %s137 = sphi 0, %s123
    %s141 = sphi 0, %s141
    %s143 = sphi 0, %s141
    %s144 = sphi 0, %s143
    %s158 = sphi 0, %s144
    %s162 = sphi 0, %s162
    %s164 = sphi 0, %s162
    %s165 = sphi 0, %s164
    %s179 = sphi 0, %s165
    %s183 = sphi 0, %s183
    %s185 = sphi 0, %s183
    %s186 = sphi 0, %s185
    %s200 = sphi 0, %s186
    %s204 = sphi 0, %s204
    %s206 = sphi 0, %s204
    %s207 = sphi 0, %s206
    %s221 = sphi 0, %s207
    %s225 = sphi 0, %s225
    %s227 = sphi 0, %s225
    %s228 = sphi 0, %s227
    %s242 = sphi 0, %s228
    %s246 = sphi 0, %s246
    %s248 = sphi 0, %s246
    %s249 = sphi 0, %s248
    %s263 = sphi 0, %s249
    %s267 = sphi 0, %s267
    %s269 = sphi 0, %s267
    %s270 = sphi 0, %s269
    %s284 = sphi 0, %s270
    %s288 = sphi 0, %s288
    %s290 = sphi 0, %s288
    %s291 = sphi 0, %s290
    %s305 = sphi 0, %s291
    %s311 = sphi 0, %s313
    %s314 = sphi 0, %s311
    %s315 = sphi 0, %s314
    %s331 = sphi 0, %s315
  $region4: #{tpu_custom_call.1} parent=0 // loop_header_branch
    %26 = sbr.rel (%p24) target = $region8
  $region5: #{tpu_custom_call.1} parent=0 // loop_body
    %s28 = ssub.s32 %s23, 1
    %s29 = ssub.s32 %s23, 2
    %s30 = sadd.s32 %s23, 1
    %s31 = ssub.s32 %s23, %s30
    %p32 = scmp.eq.s32.totalorder %s31, 0
    %s34 = sadd.s32 %s33, 1
    %s35 = scalar_select %p32, %s33, %s34
    %p38 = pneg %p32
    %p39 = scmp.eq.s32.totalorder %s23, 1
    %p40 = por %p38, %p39
    %p41 = scmp.ne.s32.totalorder %s33, %s36
    %p42 = scmp.eq.s32.totalorder %s23, 0
    %p43 = por %p41, %p42
    %p44 = scmp.ne.s32.totalorder %s33, %s36
    %p45 = scmp.eq.s32.totalorder %s28, 1
    %p46 = por %p44, %p45
    %p47 = scmp.ne.s32.totalorder %s36, %s37
    %p48 = scmp.eq.s32.totalorder %s28, 0
    %p49 = por %p47, %p48
    %p50 = scmp.ne.s32.totalorder %s36, %s37
    %p51 = scmp.eq.s32.totalorder %s29, 1
    %p52 = por %p50, %p51
    %p54 = scmp.ne.s32.totalorder %s37, %s53
    %p55 = scmp.eq.s32.totalorder %s29, 0
    %p56 = por %p54, %p55
    %s58 = sadd.s32 %s57, 1
    %p61 = scmp.eq.s32.totalorder %s23, 1
    %p62 = scmp.ne.s32.totalorder %s57, %s59
    %p63 = scmp.eq.s32.totalorder %s23, 0
    %p64 = por %p62, %p63
    %p65 = scmp.ne.s32.totalorder %s57, %s59
    %p66 = scmp.eq.s32.totalorder %s28, 1
    %p67 = por %p65, %p66
    %p68 = scmp.ne.s32.totalorder %s59, %s60
    %p69 = scmp.eq.s32.totalorder %s28, 0
    %p70 = por %p68, %p69
    %p71 = scmp.ne.s32.totalorder %s59, %s60
    %p72 = scmp.eq.s32.totalorder %s29, 1
    %p73 = por %p71, %p72
    %p75 = scmp.ne.s32.totalorder %s60, %s74
    %p76 = scmp.eq.s32.totalorder %s29, 0
    %p77 = por %p75, %p76
    %s79 = sadd.s32 %s78, 1
    %p82 = scmp.eq.s32.totalorder %s23, 1
    %p83 = scmp.ne.s32.totalorder %s78, %s80
    %p84 = scmp.eq.s32.totalorder %s23, 0
    %p85 = por %p83, %p84
    %p86 = scmp.ne.s32.totalorder %s78, %s80
    %p87 = scmp.eq.s32.totalorder %s28, 1
    %p88 = por %p86, %p87
    %p89 = scmp.ne.s32.totalorder %s80, %s81
    %p90 = scmp.eq.s32.totalorder %s28, 0
    %p91 = por %p89, %p90
    %p92 = scmp.ne.s32.totalorder %s80, %s81
    %p93 = scmp.eq.s32.totalorder %s29, 1
    %p94 = por %p92, %p93
    %p96 = scmp.ne.s32.totalorder %s81, %s95
    %p97 = scmp.eq.s32.totalorder %s29, 0
    %p98 = por %p96, %p97
    %s100 = sadd.s32 %s99, 1
    %p103 = scmp.eq.s32.totalorder %s23, 1
    %p104 = scmp.ne.s32.totalorder %s99, %s101
    %p105 = scmp.eq.s32.totalorder %s23, 0
    %p106 = por %p104, %p105
    %p107 = scmp.ne.s32.totalorder %s99, %s101
    %p108 = scmp.eq.s32.totalorder %s28, 1
    %p109 = por %p107, %p108
    %p110 = scmp.ne.s32.totalorder %s101, %s102
    %p111 = scmp.eq.s32.totalorder %s28, 0
    %p112 = por %p110, %p111
    %p113 = scmp.ne.s32.totalorder %s101, %s102
    %p114 = scmp.eq.s32.totalorder %s29, 1
    %p115 = por %p113, %p114
    %p117 = scmp.ne.s32.totalorder %s102, %s116
    %p118 = scmp.eq.s32.totalorder %s29, 0
    %p119 = por %p117, %p118
    %s121 = sadd.s32 %s120, 1
    %p124 = scmp.eq.s32.totalorder %s23, 1
    %p125 = scmp.ne.s32.totalorder %s120, %s122
    %p126 = scmp.eq.s32.totalorder %s23, 0
    %p127 = por %p125, %p126
    %p128 = scmp.ne.s32.totalorder %s120, %s122
    %p129 = scmp.eq.s32.totalorder %s28, 1
    %p130 = por %p128, %p129
    %p131 = scmp.ne.s32.totalorder %s122, %s123
    %p132 = scmp.eq.s32.totalorder %s28, 0
    %p133 = por %p131, %p132
    %p134 = scmp.ne.s32.totalorder %s122, %s123
    %p135 = scmp.eq.s32.totalorder %s29, 1
    %p136 = por %p134, %p135
    %p138 = scmp.ne.s32.totalorder %s123, %s137
    %p139 = scmp.eq.s32.totalorder %s29, 0
    %p140 = por %p138, %p139
    %s142 = sadd.s32 %s141, 1
    %p145 = scmp.eq.s32.totalorder %s23, 1
    %p146 = scmp.ne.s32.totalorder %s141, %s143
    %p147 = scmp.eq.s32.totalorder %s23, 0
    %p148 = por %p146, %p147
    %p149 = scmp.ne.s32.totalorder %s141, %s143
    %p150 = scmp.eq.s32.totalorder %s28, 1
    %p151 = por %p149, %p150
    %p152 = scmp.ne.s32.totalorder %s143, %s144
    %p153 = scmp.eq.s32.totalorder %s28, 0
    %p154 = por %p152, %p153
    %p155 = scmp.ne.s32.totalorder %s143, %s144
    %p156 = scmp.eq.s32.totalorder %s29, 1
    %p157 = por %p155, %p156
    %p159 = scmp.ne.s32.totalorder %s144, %s158
    %p160 = scmp.eq.s32.totalorder %s29, 0
    %p161 = por %p159, %p160
    %s163 = sadd.s32 %s162, 1
    %p166 = scmp.eq.s32.totalorder %s23, 1
    %p167 = scmp.ne.s32.totalorder %s162, %s164
    %p168 = scmp.eq.s32.totalorder %s23, 0
    %p169 = por %p167, %p168
    %p170 = scmp.ne.s32.totalorder %s162, %s164
    %p171 = scmp.eq.s32.totalorder %s28, 1
    %p172 = por %p170, %p171
    %p173 = scmp.ne.s32.totalorder %s164, %s165
    %p174 = scmp.eq.s32.totalorder %s28, 0
    %p175 = por %p173, %p174
    %p176 = scmp.ne.s32.totalorder %s164, %s165
    %p177 = scmp.eq.s32.totalorder %s29, 1
    %p178 = por %p176, %p177
    %p180 = scmp.ne.s32.totalorder %s165, %s179
    %p181 = scmp.eq.s32.totalorder %s29, 0
    %p182 = por %p180, %p181
    %s184 = sadd.s32 %s183, 1
    %p187 = scmp.eq.s32.totalorder %s23, 1
    %p188 = scmp.ne.s32.totalorder %s183, %s185
    %p189 = scmp.eq.s32.totalorder %s23, 0
    %p190 = por %p188, %p189
    %p191 = scmp.ne.s32.totalorder %s183, %s185
    %p192 = scmp.eq.s32.totalorder %s28, 1
    %p193 = por %p191, %p192
    %p194 = scmp.ne.s32.totalorder %s185, %s186
    %p195 = scmp.eq.s32.totalorder %s28, 0
    %p196 = por %p194, %p195
    %p197 = scmp.ne.s32.totalorder %s185, %s186
    %p198 = scmp.eq.s32.totalorder %s29, 1
    %p199 = por %p197, %p198
    %p201 = scmp.ne.s32.totalorder %s186, %s200
    %p202 = scmp.eq.s32.totalorder %s29, 0
    %p203 = por %p201, %p202
    %s205 = sadd.s32 %s204, 1
    %p208 = scmp.eq.s32.totalorder %s23, 1
    %p209 = scmp.ne.s32.totalorder %s204, %s206
    %p210 = scmp.eq.s32.totalorder %s23, 0
    %p211 = por %p209, %p210
    %p212 = scmp.ne.s32.totalorder %s204, %s206
    %p213 = scmp.eq.s32.totalorder %s28, 1
    %p214 = por %p212, %p213
    %p215 = scmp.ne.s32.totalorder %s206, %s207
    %p216 = scmp.eq.s32.totalorder %s28, 0
    %p217 = por %p215, %p216
    %p218 = scmp.ne.s32.totalorder %s206, %s207
    %p219 = scmp.eq.s32.totalorder %s29, 1
    %p220 = por %p218, %p219
    %p222 = scmp.ne.s32.totalorder %s207, %s221
    %p223 = scmp.eq.s32.totalorder %s29, 0
    %p224 = por %p222, %p223
    %s226 = sadd.s32 %s225, 1
    %p229 = scmp.eq.s32.totalorder %s23, 1
    %p230 = scmp.ne.s32.totalorder %s225, %s227
    %p231 = scmp.eq.s32.totalorder %s23, 0
    %p232 = por %p230, %p231
    %p233 = scmp.ne.s32.totalorder %s225, %s227
    %p234 = scmp.eq.s32.totalorder %s28, 1
    %p235 = por %p233, %p234
    %p236 = scmp.ne.s32.totalorder %s227, %s228
    %p237 = scmp.eq.s32.totalorder %s28, 0
    %p238 = por %p236, %p237
    %p239 = scmp.ne.s32.totalorder %s227, %s228
    %p240 = scmp.eq.s32.totalorder %s29, 1
    %p241 = por %p239, %p240
    %p243 = scmp.ne.s32.totalorder %s228, %s242
    %p244 = scmp.eq.s32.totalorder %s29, 0
    %p245 = por %p243, %p244
    %s247 = sadd.s32 %s246, 1
    %p250 = scmp.eq.s32.totalorder %s23, 1
    %p251 = scmp.ne.s32.totalorder %s246, %s248
    %p252 = scmp.eq.s32.totalorder %s23, 0
    %p253 = por %p251, %p252
    %p254 = scmp.ne.s32.totalorder %s246, %s248
    %p255 = scmp.eq.s32.totalorder %s28, 1
    %p256 = por %p254, %p255
    %p257 = scmp.ne.s32.totalorder %s248, %s249
    %p258 = scmp.eq.s32.totalorder %s28, 0
    %p259 = por %p257, %p258
    %p260 = scmp.ne.s32.totalorder %s248, %s249
    %p261 = scmp.eq.s32.totalorder %s29, 1
    %p262 = por %p260, %p261
    %p264 = scmp.ne.s32.totalorder %s249, %s263
    %p265 = scmp.eq.s32.totalorder %s29, 0
    %p266 = por %p264, %p265
    %s268 = sadd.s32 %s267, 1
    %p271 = scmp.eq.s32.totalorder %s23, 1
    %p272 = scmp.ne.s32.totalorder %s267, %s269
    %p273 = scmp.eq.s32.totalorder %s23, 0
    %p274 = por %p272, %p273
    %p275 = scmp.ne.s32.totalorder %s267, %s269
    %p276 = scmp.eq.s32.totalorder %s28, 1
    %p277 = por %p275, %p276
    %p278 = scmp.ne.s32.totalorder %s269, %s270
    %p279 = scmp.eq.s32.totalorder %s28, 0
    %p280 = por %p278, %p279
    %p281 = scmp.ne.s32.totalorder %s269, %s270
    %p282 = scmp.eq.s32.totalorder %s29, 1
    %p283 = por %p281, %p282
    %p285 = scmp.ne.s32.totalorder %s270, %s284
    %p286 = scmp.eq.s32.totalorder %s29, 0
    %p287 = por %p285, %p286
    %s289 = sadd.s32 %s288, 1
    %p292 = scmp.eq.s32.totalorder %s23, 1
    %p293 = scmp.ne.s32.totalorder %s288, %s290
    %p294 = scmp.eq.s32.totalorder %s23, 0
    %p295 = por %p293, %p294
    %p296 = scmp.ne.s32.totalorder %s288, %s290
    %p297 = scmp.eq.s32.totalorder %s28, 1
    %p298 = por %p296, %p297
    %p299 = scmp.ne.s32.totalorder %s290, %s291
    %p300 = scmp.eq.s32.totalorder %s28, 0
    %p301 = por %p299, %p300
    %p302 = scmp.ne.s32.totalorder %s290, %s291
    %p303 = scmp.eq.s32.totalorder %s29, 1
    %p304 = por %p302, %p303
    %p306 = scmp.ne.s32.totalorder %s291, %s305
    %p307 = scmp.eq.s32.totalorder %s29, 0
    %p308 = por %p306, %p307
    %s309 = ssub.s32 %s23, %s30
    %p310 = scmp.eq.s32.totalorder %s309, 0
    %s312 = sadd.s32 %s311, 1
    %s313 = scalar_select %p310, %s311, %s312
    %p316 = pneg %p310
    %p317 = scmp.eq.s32.totalorder %s23, 1
    %p318 = por %p316, %p317
    %p319 = scmp.ne.s32.totalorder %s311, %s314
    %p320 = scmp.eq.s32.totalorder %s23, 0
    %p321 = por %p319, %p320
    %p322 = scmp.ne.s32.totalorder %s311, %s314
    %p323 = scmp.eq.s32.totalorder %s28, 1
    %p324 = por %p322, %p323
    %p325 = scmp.ne.s32.totalorder %s314, %s315
    %p326 = scmp.eq.s32.totalorder %s28, 0
    %p327 = por %p325, %p326
    %p328 = scmp.ne.s32.totalorder %s314, %s315
    %p329 = scmp.eq.s32.totalorder %s29, 1
    %p330 = por %p328, %p329
    %p332 = scmp.ne.s32.totalorder %s315, %s331
    %p333 = scmp.eq.s32.totalorder %s29, 0
    %p334 = por %p332, %p333
    %p335 = scmp.le.s32.totalorder 1, %s23
    %p336 = scmp.lt.s32.totalorder %s23, 3
    %p337 = pnand %p335, %p336
    %p338 = pneg %p337
    // Predicated region
    $region9: #{tpu_custom_call.1} parent=5 // pred_check
      _
    $region10: #{tpu_custom_call.1} parent=5 // pred_check_branch
      %340 = sbr.rel (%p337) target = $region12
    $region11: #{tpu_custom_call.1} parent=5 // pred_region
      %s341 = ssub.s32 %s23, 1
      // Predicated region
      $region13: #{tpu_custom_call.1} parent=11 // pred_check
        %p342 = pneg %p70
      $region14: #{tpu_custom_call.1} parent=11 // pred_check_branch
        %344 = sbr.rel (%p342) target = $region16
      $region15: #{tpu_custom_call.1} parent=11 // pred_region
        _
      $region16: #{tpu_custom_call.1} parent=11 // pred_fallthru
        _
      // Predicated region
      $region17: #{tpu_custom_call.1} parent=11 // pred_check
        %p345 = pneg %p91
      $region18: #{tpu_custom_call.1} parent=11 // pred_check_branch
        %347 = sbr.rel (%p345) target = $region20
      $region19: #{tpu_custom_call.1} parent=11 // pred_region
        _
      $region20: #{tpu_custom_call.1} parent=11 // pred_fallthru
        _
      // Predicated region
      $region21: #{tpu_custom_call.1} parent=11 // pred_check
        %p348 = pneg %p112
      $region22: #{tpu_custom_call.1} parent=11 // pred_check_branch
        %350 = sbr.rel (%p348) target = $region24
      $region23: #{tpu_custom_call.1} parent=11 // pred_region
        _
      $region24: #{tpu_custom_call.1} parent=11 // pred_fallthru
        _
      // Predicated region
      $region25: #{tpu_custom_call.1} parent=11 // pred_check
        %p351 = pneg %p133
      $region26: #{tpu_custom_call.1} parent=11 // pred_check_branch
        %353 = sbr.rel (%p351) target = $region28
      $region27: #{tpu_custom_call.1} parent=11 // pred_region
        _
      $region28: #{tpu_custom_call.1} parent=11 // pred_fallthru
        _
      // Predicated region
      $region29: #{tpu_custom_call.1} parent=11 // pred_check
        %p354 = pneg %p154
      $region30: #{tpu_custom_call.1} parent=11 // pred_check_branch
        %356 = sbr.rel (%p354) target = $region32
      $region31: #{tpu_custom_call.1} parent=11 // pred_region
        _
      $region32: #{tpu_custom_call.1} parent=11 // pred_fallthru
        _
      // Predicated region
      $region33: #{tpu_custom_call.1} parent=11 // pred_check
        %p357 = pneg %p175
      $region34: #{tpu_custom_call.1} parent=11 // pred_check_branch
        %359 = sbr.rel (%p357) target = $region36
      $region35: #{tpu_custom_call.1} parent=11 // pred_region
        _
      $region36: #{tpu_custom_call.1} parent=11 // pred_fallthru
        _
      // Predicated region
      $region37: #{tpu_custom_call.1} parent=11 // pred_check
        %p360 = pneg %p196
      $region38: #{tpu_custom_call.1} parent=11 // pred_check_branch
        %362 = sbr.rel (%p360) target = $region40
      $region39: #{tpu_custom_call.1} parent=11 // pred_region
        _
      $region40: #{tpu_custom_call.1} parent=11 // pred_fallthru
        _
      // Predicated region
      $region41: #{tpu_custom_call.1} parent=11 // pred_check
        %p363 = pneg %p217
      $region42: #{tpu_custom_call.1} parent=11 // pred_check_branch
        %365 = sbr.rel (%p363) target = $region44
      $region43: #{tpu_custom_call.1} parent=11 // pred_region
        _
      $region44: #{tpu_custom_call.1} parent=11 // pred_fallthru
        _
      // Predicated region
      $region45: #{tpu_custom_call.1} parent=11 // pred_check
        %p366 = pneg %p238
      $region46: #{tpu_custom_call.1} parent=11 // pred_check_branch
        %368 = sbr.rel (%p366) target = $region48
      $region47: #{tpu_custom_call.1} parent=11 // pred_region
        _
      $region48: #{tpu_custom_call.1} parent=11 // pred_fallthru
        _
      // Predicated region
      $region49: #{tpu_custom_call.1} parent=11 // pred_check
        %p369 = pneg %p259
      $region50: #{tpu_custom_call.1} parent=11 // pred_check_branch
        %371 = sbr.rel (%p369) target = $region52
      $region51: #{tpu_custom_call.1} parent=11 // pred_region
        _
      $region52: #{tpu_custom_call.1} parent=11 // pred_fallthru
        _
      // Predicated region
      $region53: #{tpu_custom_call.1} parent=11 // pred_check
        %p372 = pneg %p280
      $region54: #{tpu_custom_call.1} parent=11 // pred_check_branch
        %374 = sbr.rel (%p372) target = $region56
      $region55: #{tpu_custom_call.1} parent=11 // pred_region
        _
      $region56: #{tpu_custom_call.1} parent=11 // pred_fallthru
        _
      // Predicated region
      $region57: #{tpu_custom_call.1} parent=11 // pred_check
        %p375 = pneg %p301
      $region58: #{tpu_custom_call.1} parent=11 // pred_check_branch
        %377 = sbr.rel (%p375) target = $region60
      $region59: #{tpu_custom_call.1} parent=11 // pred_region
        _
      $region60: #{tpu_custom_call.1} parent=11 // pred_fallthru
        _
    $region12: #{tpu_custom_call.1} parent=5 // pred_fallthru
      _
    %p378 = scmp.lt.s32.totalorder %s23, 2
    // Predicated region
    $region61: #{tpu_custom_call.1} parent=5 // pred_check
      %p379 = pneg %p378
    $region62: #{tpu_custom_call.1} parent=5 // pred_check_branch
      %381 = sbr.rel (%p379) target = $region64
    $region63: #{tpu_custom_call.1} parent=5 // pred_region
      // Predicated region
      $region65: #{tpu_custom_call.1} parent=63 // pred_check
        %p382 = pneg %p43
      $region66: #{tpu_custom_call.1} parent=63 // pred_check_branch
        %384 = sbr.rel (%p382) target = $region68
      $region67: #{tpu_custom_call.1} parent=63 // pred_region
        %p385 = scmp.lt.s32.totalorder %s23, 1
        %s386 = scalar_select %p385, %s23, 1
        %s387 = smul.addr %s386, 8
        %s388 = scalar_lea.vmem %s0, %s387
      $region68: #{tpu_custom_call.1} parent=63 // pred_fallthru
        _
    $region64: #{tpu_custom_call.1} parent=5 // pred_fallthru
      _
    %p389 = scmp.le.s32.totalorder 1, %s23
    %p390 = scmp.lt.s32.totalorder %s23, 3
    %p391 = pnand %p389, %p390
    %p392 = pneg %p391
    // Predicated region
    $region69: #{tpu_custom_call.1} parent=5 // pred_check
      _
    $region70: #{tpu_custom_call.1} parent=5 // pred_check_branch
      %394 = sbr.rel (%p391) target = $region72
    $region71: #{tpu_custom_call.1} parent=5 // pred_region
      %s395 = ssub.s32 %s23, 1
      %p396 = scmp.lt.s32.totalorder %s28, 1
      %s397 = scalar_select %p396, %s28, 1
      %s398 = smul.addr %s397, 8
      %s399 = scalar_lea.vmem %s0, %s398
      %p400 = pneg %p49
      %p401 = pneg %p46
      %p402 = pneg %p70
      %p403 = pneg %p67
      %p404 = pneg %p91
      %p405 = pneg %p88
      %p406 = pneg %p112
      %p407 = pneg %p109
      %p408 = pneg %p133
      %p409 = pneg %p130
      %p410 = pneg %p154
      %p411 = pneg %p151
      %p412 = pneg %p175
      %p413 = pneg %p172
      %p414 = pneg %p196
      %p415 = pneg %p193
      %p416 = pneg %p217
      %p417 = pneg %p214
      %p418 = pneg %p238
      %p419 = pneg %p235
      %p420 = pneg %p259
      %p421 = pneg %p256
      %p422 = pneg %p280
      %p423 = pneg %p277
      %p424 = pneg %p301
      %p425 = pneg %p298
      %p426 = pneg %p327
      %p427 = pneg %p324
      %p428 = scmp.lt.s32.totalorder %s28, 1
      %s429 = scalar_select %p428, %s28, 1
      %s430 = smul.addr %s429, 8
      %s431 = scalar_lea.vmem %s13, %s430
      %p432 = scmp.lt.s32.totalorder %s28, 1
      %s433 = scalar_select %p432, %s28, 1
      %s434 = smul.addr %s433, 8
      %s435 = scalar_lea.vmem %s0, %s434
      %p436 = scmp.lt.s32.totalorder %s28, 1
      %s437 = scalar_select %p436, %s28, 1
      %s438 = smul.addr %s437, 8
      %s439 = scalar_lea.vmem %s13, %s438
      %v441 = vld [vmem:[%s435] sm:$0xff]
      %v442 = vld [vmem:[%s1] sm:$0xf]
      %v443 = vld [vmem:[%s1 + $0x4] sm:$0xf]
      %v444 = vld [vmem:[%s1 + $0x8] sm:$0xf]
      %v445 = vld [vmem:[%s1 + $0xc] sm:$0xf]
      %v446 = vld [vmem:[%s2] sm:$0x1]
      %v447 = vpack.c.bf16 %v441, %v441
      %v449 = vlaneseq
      %v450 = vshrl.u32 %v449, 7
      %v451 = vsub.s32 0, %v450
      %v452 = vrot.slane %v446, %v451
      %v458 = vunpack.c.l.b16 %v442
      %v459 = vunpack.c.l.b16 %v443
      %v460 = vunpack.c.l.b16 %v444
      %v461 = vunpack.c.l.b16 %v445
      %v462 = vpack.c.b16 %v459, %v458
      %v463 = vpack.c.b16 %v461, %v460
      %vm466 = vcmask 261120
      %v468 = vsel %vm466, %v447, 0
      %470 = vmatprep.subr.bf16.mxu0 0
      %471 = vmatpush1.bf16.msra.mxu0 %v462
      %472 = vmatprep.subr.bf16.mxu0 0
      %473 = vmatpush1.bf16.msra.mxu0 %v463
      %474 = vmatprep.subr.bf16.mxu0 0
      %475 = vmatpush1.bf16.msra.mxu0 0
      %476 = vmatprep.subr.bf16.mxu0 0
      %477 = vmatpush1.bf16.msra.mxu0 0
      %478 = vmatprep.subr.bf16.mxu0 0
      %479 = vmatpush1.bf16.msra.mxu0 0
      %480 = vmatprep.subr.bf16.mxu0 0
      %481 = vmatpush1.bf16.msra.mxu0 0
      %482 = vmatprep.subr.bf16.mxu0 0
      %483 = vmatpush1.bf16.msra.mxu0 0
      %484 = vmatprep.subr.bf16.mxu0 0
      %485 = vmatpush1.bf16.msra.mxu0 0
      %486 = vmatprep.subr.bf16.mxu0 0
      %487 = vmatpush1.bf16.msra.mxu0 0
      %488 = vmatprep.subr.bf16.mxu0 0
      %489 = vmatpush1.bf16.msra.mxu0 0
      %490 = vmatprep.subr.bf16.mxu0 0
      %491 = vmatpush1.bf16.msra.mxu0 0
      %492 = vmatprep.subr.bf16.mxu0 0
      %493 = vmatpush1.bf16.msra.mxu0 0
      %494 = vmatprep.subr.bf16.mxu0 0
      %495 = vmatpush1.bf16.msra.mxu0 0
      %496 = vmatprep.subr.bf16.mxu0 0
      %497 = vmatpush1.bf16.msra.mxu0 0
      %498 = vmatprep.subr.bf16.mxu0 0
      %499 = vmatpush1.bf16.msra.mxu0 0
      %500 = vmatprep.subr.bf16.mxu0 0
      %501 = vmatpush1.bf16.msra.mxu0 0
      %502 = vmatprep.mubr.bf16.mxu0 0
      %503 = vmatmul.mubr.bf16.gmra.mrb[0].mxu0 %v468
      %v504 = vpop.f32.mrb[0].mxu0
      %v505 = vadd.f32 %v452, %v504
      %v506 = vpop.f32.mrb[0].mxu0
      %v507 = vpop.f32.mrb[0].mxu0
      %v508 = vpop.f32.mrb[0].mxu0
      %509 = vdwg.mxu0
      %vm510 = vcmp.ge.f32.partialorder %v505, 0.0
      %v511 = vmul.f32 %v505, 0.01
      %v512 = vsel %vm510, %v505, %v511
      %v513 = vld [vmem:[%s3] sm:$0xf]
      %v514 = vld [vmem:[%s3 + $0x4] sm:$0xf]
      %v515 = vld [vmem:[%s3 + $0x8] sm:$0xf]
      %v516 = vld [vmem:[%s3 + $0xc] sm:$0xf]
      %v517 = vld [vmem:[%s3 + $0x10] sm:$0xf]
      %v518 = vld [vmem:[%s3 + $0x14] sm:$0xf]
      %v519 = vld [vmem:[%s3 + $0x18] sm:$0xf]
      %v520 = vld [vmem:[%s3 + $0x1c] sm:$0xf]
      %v521 = vld [vmem:[%s4] sm:$0x1]
      %v522 = vpack.c.bf16 %v512, %v512
      %v524 = vlaneseq
      %v525 = vshrl.u32 %v524, 7
      %v526 = vsub.s32 0, %v525
      %v527 = vrot.slane %v521, %v526
      %v537 = vunpack.c.l.b16 %v513
      %v538 = vunpack.c.l.b16 %v514
      %v539 = vunpack.c.l.b16 %v515
      %v540 = vunpack.c.l.b16 %v516
      %v541 = vunpack.c.l.b16 %v517
      %v542 = vunpack.c.l.b16 %v518
      %v543 = vunpack.c.l.b16 %v519
      %v544 = vunpack.c.l.b16 %v520
      %v545 = vpack.c.b16 %v538, %v537
      %v546 = vpack.c.b16 %v540, %v539
      %v547 = vpack.c.b16 %v542, %v541
      %v548 = vpack.c.b16 %v544, %v543
      %vm553 = vcmask 523264
      %v555 = vsel %vm553, %v522, 0
      %557 = vmatprep.subr.bf16.mxu0 0
      %558 = vmatpush1.bf16.msra.mxu0 %v545
      %559 = vmatprep.subr.bf16.mxu0 0
      %560 = vmatpush1.bf16.msra.mxu0 %v546
      %561 = vmatprep.subr.bf16.mxu0 0
      %562 = vmatpush1.bf16.msra.mxu0 %v547
      %563 = vmatprep.subr.bf16.mxu0 0
      %564 = vmatpush1.bf16.msra.mxu0 %v548
      %565 = vmatprep.subr.bf16.mxu0 0
      %566 = vmatpush1.bf16.msra.mxu0 0
      %567 = vmatprep.subr.bf16.mxu0 0
      %568 = vmatpush1.bf16.msra.mxu0 0
      %569 = vmatprep.subr.bf16.mxu0 0
      %570 = vmatpush1.bf16.msra.mxu0 0
      %571 = vmatprep.subr.bf16.mxu0 0
      %572 = vmatpush1.bf16.msra.mxu0 0
      %573 = vmatprep.subr.bf16.mxu0 0
      %574 = vmatpush1.bf16.msra.mxu0 0
      %575 = vmatprep.subr.bf16.mxu0 0
      %576 = vmatpush1.bf16.msra.mxu0 0
      %577 = vmatprep.subr.bf16.mxu0 0
      %578 = vmatpush1.bf16.msra.mxu0 0
      %579 = vmatprep.subr.bf16.mxu0 0
      %580 = vmatpush1.bf16.msra.mxu0 0
      %581 = vmatprep.subr.bf16.mxu0 0
      %582 = vmatpush1.bf16.msra.mxu0 0
      %583 = vmatprep.subr.bf16.mxu0 0
      %584 = vmatpush1.bf16.msra.mxu0 0
      %585 = vmatprep.subr.bf16.mxu0 0
      %586 = vmatpush1.bf16.msra.mxu0 0
      %587 = vmatprep.subr.bf16.mxu0 0
      %588 = vmatpush1.bf16.msra.mxu0 0
      %589 = vmatprep.mubr.bf16.mxu0 0
      %590 = vmatmul.mubr.bf16.gmra.mrb[0].mxu0 %v555
      %v591 = vpop.f32.mrb[0].mxu0
      %v592 = vadd.f32 %v527, %v591
      %v593 = vpop.f32.mrb[0].mxu0
      %v594 = vpop.f32.mrb[0].mxu0
      %v595 = vpop.f32.mrb[0].mxu0
      %596 = vdwg.mxu0
      %vm597 = vcmp.ge.f32.partialorder %v592, 0.0
      %v598 = vmul.f32 %v592, 0.01
      %v599 = vsel %vm597, %v592, %v598
      %v600 = vld [vmem:[%s5] sm:$0xf]
      %v601 = vld [vmem:[%s5 + $0x4] sm:$0xf]
      %v602 = vld [vmem:[%s5 + $0x8] sm:$0xf]
      %v603 = vld [vmem:[%s5 + $0xc] sm:$0xf]
      %v604 = vld [vmem:[#allocation2] sm:$0x1]
      %v605 = vpack.c.bf16 %v599, %v599
      %v607 = vlaneseq
      %v608 = vshrl.u32 %v607, 7
      %v609 = vsub.s32 0, %v608
      %v610 = vrot.slane %v604, %v609
      %v616 = vunpack.c.l.b16 %v600
      %v617 = vunpack.c.l.b16 %v601
      %v618 = vunpack.c.l.b16 %v602
      %v619 = vunpack.c.l.b16 %v603
      %v620 = vpack.c.b16 %v617, %v616
      %v621 = vpack.c.b16 %v619, %v618
      %v625 = vsel %vm466, %v605, 0
      %627 = vmatprep.subr.bf16.mxu0 0
      %628 = vmatpush1.bf16.msra.mxu0 %v620
      %629 = vmatprep.subr.bf16.mxu0 0
      %630 = vmatpush1.bf16.msra.mxu0 %v621
      %631 = vmatprep.subr.bf16.mxu0 0
      %632 = vmatpush1.bf16.msra.mxu0 0
      %633 = vmatprep.subr.bf16.mxu0 0
      %634 = vmatpush1.bf16.msra.mxu0 0
      %635 = vmatprep.subr.bf16.mxu0 0
      %636 = vmatpush1.bf16.msra.mxu0 0
      %637 = vmatprep.subr.bf16.mxu0 0
      %638 = vmatpush1.bf16.msra.mxu0 0
      %639 = vmatprep.subr.bf16.mxu0 0
      %640 = vmatpush1.bf16.msra.mxu0 0
      %641 = vmatprep.subr.bf16.mxu0 0
      %642 = vmatpush1.bf16.msra.mxu0 0
      %643 = vmatprep.subr.bf16.mxu0 0
      %644 = vmatpush1.bf16.msra.mxu0 0
      %645 = vmatprep.subr.bf16.mxu0 0
      %646 = vmatpush1.bf16.msra.mxu0 0
      %647 = vmatprep.subr.bf16.mxu0 0
      %648 = vmatpush1.bf16.msra.mxu0 0
      %649 = vmatprep.subr.bf16.mxu0 0
      %650 = vmatpush1.bf16.msra.mxu0 0
      %651 = vmatprep.subr.bf16.mxu0 0
      %652 = vmatpush1.bf16.msra.mxu0 0
      %653 = vmatprep.subr.bf16.mxu0 0
      %654 = vmatpush1.bf16.msra.mxu0 0
      %655 = vmatprep.subr.bf16.mxu0 0
      %656 = vmatpush1.bf16.msra.mxu0 0
      %657 = vmatprep.subr.bf16.mxu0 0
      %658 = vmatpush1.bf16.msra.mxu0 0
      %659 = vmatprep.mubr.bf16.mxu0 0
      %660 = vmatmul.mubr.bf16.gmra.mrb[0].mxu0 %v625
      %v661 = vpop.f32.mrb[0].mxu0
      %v662 = vadd.f32 %v610, %v661
      %v663 = vpop.f32.mrb[0].mxu0
      %v664 = vpop.f32.mrb[0].mxu0
      %v665 = vpop.f32.mrb[0].mxu0
      %666 = vdwg.mxu0
      %v667 = vmul.f32 %v662, 0.5
      %v668 = vtanh.pop %v667
      %v669 = vadd.f32 %v668, 1.0
      %v670 = vmul.f32 %v669, 0.5
      %v671 = vadd.f32 %v670, 0.0
      %v672 = vld [vmem:[%s7] sm:$0xf]
      %v673 = vld [vmem:[%s7 + $0x4] sm:$0xf]
      %v674 = vld [vmem:[%s7 + $0x8] sm:$0xf]
      %v675 = vld [vmem:[%s7 + $0xc] sm:$0xf]
      %v676 = vld [vmem:[%s8] sm:$0x1]
      %v678 = vlaneseq
      %v679 = vshrl.u32 %v678, 7
      %v680 = vsub.s32 0, %v679
      %v681 = vrot.slane %v676, %v680
      %v687 = vunpack.c.l.b16 %v672
      %v688 = vunpack.c.l.b16 %v673
      %v689 = vunpack.c.l.b16 %v674
      %v690 = vunpack.c.l.b16 %v675
      %v691 = vpack.c.b16 %v688, %v687
      %v692 = vpack.c.b16 %v690, %v689
      %695 = vmatprep.subr.bf16.mxu0 0
      %696 = vmatpush1.bf16.msra.mxu0 %v691
      %697 = vmatprep.subr.bf16.mxu0 0
      %698 = vmatpush1.bf16.msra.mxu0 %v692
      %699 = vmatprep.subr.bf16.mxu0 0
      %700 = vmatpush1.bf16.msra.mxu0 0
      %701 = vmatprep.subr.bf16.mxu0 0
      %702 = vmatpush1.bf16.msra.mxu0 0
      %703 = vmatprep.subr.bf16.mxu0 0
      %704 = vmatpush1.bf16.msra.mxu0 0
      %705 = vmatprep.subr.bf16.mxu0 0
      %706 = vmatpush1.bf16.msra.mxu0 0
      %707 = vmatprep.subr.bf16.mxu0 0
      %708 = vmatpush1.bf16.msra.mxu0 0
      %709 = vmatprep.subr.bf16.mxu0 0
      %710 = vmatpush1.bf16.msra.mxu0 0
      %711 = vmatprep.subr.bf16.mxu0 0
      %712 = vmatpush1.bf16.msra.mxu0 0
      %713 = vmatprep.subr.bf16.mxu0 0
      %714 = vmatpush1.bf16.msra.mxu0 0
      %715 = vmatprep.subr.bf16.mxu0 0
      %716 = vmatpush1.bf16.msra.mxu0 0
      %717 = vmatprep.subr.bf16.mxu0 0
      %718 = vmatpush1.bf16.msra.mxu0 0
      %719 = vmatprep.subr.bf16.mxu0 0
      %720 = vmatpush1.bf16.msra.mxu0 0
      %721 = vmatprep.subr.bf16.mxu0 0
      %722 = vmatpush1.bf16.msra.mxu0 0
      %723 = vmatprep.subr.bf16.mxu0 0
      %724 = vmatpush1.bf16.msra.mxu0 0
      %725 = vmatprep.subr.bf16.mxu0 0
      %726 = vmatpush1.bf16.msra.mxu0 0
      %727 = vmatprep.mubr.bf16.mxu0 0
      %728 = vmatmul.mubr.bf16.gmra.mrb[0].mxu0 %v625
      %v729 = vpop.f32.mrb[0].mxu0
      %v730 = vadd.f32 %v681, %v729
      %v731 = vpop.f32.mrb[0].mxu0
      %v732 = vpop.f32.mrb[0].mxu0
      %v733 = vpop.f32.mrb[0].mxu0
      %734 = vdwg.mxu0
      %vm735 = vcmp.ge.f32.partialorder %v730, 0.0
      %v736 = vmul.f32 %v730, 0.01
      %v737 = vsel %vm735, %v730, %v736
      %v738 = vld [vmem:[%s9] sm:$0xf]
      %v739 = vld [vmem:[%s9 + $0x4] sm:$0xf]
      %v740 = vld [vmem:[%s9 + $0x8] sm:$0xf]
      %v741 = vld [vmem:[%s9 + $0xc] sm:$0xf]
      %v742 = vld [vmem:[%s9 + $0x10] sm:$0xf]
      %v743 = vld [vmem:[%s9 + $0x14] sm:$0xf]
      %v744 = vld [vmem:[%s9 + $0x18] sm:$0xf]
      %v745 = vld [vmem:[%s9 + $0x1c] sm:$0xf]
      %v746 = vld [vmem:[%s10] sm:$0x1]
      %v747 = vpack.c.bf16 %v737, %v737
      %v749 = vlaneseq
      %v750 = vshrl.u32 %v749, 7
      %v751 = vsub.s32 0, %v750
      %v752 = vrot.slane %v746, %v751
      %v762 = vunpack.c.l.b16 %v738
      %v763 = vunpack.c.l.b16 %v739
      %v764 = vunpack.c.l.b16 %v740
      %v765 = vunpack.c.l.b16 %v741
      %v766 = vunpack.c.l.b16 %v742
      %v767 = vunpack.c.l.b16 %v743
      %v768 = vunpack.c.l.b16 %v744
      %v769 = vunpack.c.l.b16 %v745
      %v770 = vpack.c.b16 %v763, %v762
      %v771 = vpack.c.b16 %v765, %v764
      %v772 = vpack.c.b16 %v767, %v766
      %v773 = vpack.c.b16 %v769, %v768
      %v779 = vsel %vm553, %v747, 0
      %781 = vmatprep.subr.bf16.mxu0 0
      %782 = vmatpush1.bf16.msra.mxu0 %v770
      %783 = vmatprep.subr.bf16.mxu0 0
      %784 = vmatpush1.bf16.msra.mxu0 %v771
      %785 = vmatprep.subr.bf16.mxu0 0
      %786 = vmatpush1.bf16.msra.mxu0 %v772
      %787 = vmatprep.subr.bf16.mxu0 0
      %788 = vmatpush1.bf16.msra.mxu0 %v773
      %789 = vmatprep.subr.bf16.mxu0 0
      %790 = vmatpush1.bf16.msra.mxu0 0
      %791 = vmatprep.subr.bf16.mxu0 0
      %792 = vmatpush1.bf16.msra.mxu0 0
      %793 = vmatprep.subr.bf16.mxu0 0
      %794 = vmatpush1.bf16.msra.mxu0 0
      %795 = vmatprep.subr.bf16.mxu0 0
      %796 = vmatpush1.bf16.msra.mxu0 0
      %797 = vmatprep.subr.bf16.mxu0 0
      %798 = vmatpush1.bf16.msra.mxu0 0
      %799 = vmatprep.subr.bf16.mxu0 0
      %800 = vmatpush1.bf16.msra.mxu0 0
      %801 = vmatprep.subr.bf16.mxu0 0
      %802 = vmatpush1.bf16.msra.mxu0 0
      %803 = vmatprep.subr.bf16.mxu0 0
      %804 = vmatpush1.bf16.msra.mxu0 0
      %805 = vmatprep.subr.bf16.mxu0 0
      %806 = vmatpush1.bf16.msra.mxu0 0
      %807 = vmatprep.subr.bf16.mxu0 0
      %808 = vmatpush1.bf16.msra.mxu0 0
      %809 = vmatprep.subr.bf16.mxu0 0
      %810 = vmatpush1.bf16.msra.mxu0 0
      %811 = vmatprep.subr.bf16.mxu0 0
      %812 = vmatpush1.bf16.msra.mxu0 0
      %813 = vmatprep.mubr.bf16.mxu0 0
      %814 = vmatmul.mubr.bf16.gmra.mrb[0].mxu0 %v779
      %v815 = vpop.f32.mrb[0].mxu0
      %v816 = vadd.f32 %v752, %v815
      %v817 = vpop.f32.mrb[0].mxu0
      %v818 = vpop.f32.mrb[0].mxu0
      %v819 = vpop.f32.mrb[0].mxu0
      %820 = vdwg.mxu0
      %vm821 = vcmp.ge.f32.partialorder %v816, 0.0
      %v822 = vmul.f32 %v816, 0.01
      %v823 = vsel %vm821, %v816, %v822
      %v824 = vld [vmem:[%s11] sm:$0xf]
      %v825 = vld [vmem:[%s11 + $0x4] sm:$0xf]
      %v826 = vld [vmem:[%s11 + $0x8] sm:$0xf]
      %v827 = vld [vmem:[%s11 + $0xc] sm:$0xf]
      %v828 = vld [vmem:[#allocation3] sm:$0x1]
      %v829 = vpack.c.bf16 %v823, %v823
      %v831 = vlaneseq
      %v832 = vshrl.u32 %v831, 7
      %v833 = vsub.s32 0, %v832
      %v834 = vrot.slane %v828, %v833
      %v840 = vunpack.c.l.b16 %v824
      %v841 = vunpack.c.l.b16 %v825
      %v842 = vunpack.c.l.b16 %v826
      %v843 = vunpack.c.l.b16 %v827
      %v844 = vpack.c.b16 %v841, %v840
      %v845 = vpack.c.b16 %v843, %v842
      %v849 = vsel %vm466, %v829, 0
      %851 = vmatprep.subr.bf16.mxu0 0
      %852 = vmatpush1.bf16.msra.mxu0 %v844
      %853 = vmatprep.subr.bf16.mxu0 0
      %854 = vmatpush1.bf16.msra.mxu0 %v845
      %855 = vmatprep.subr.bf16.mxu0 0
      %856 = vmatpush1.bf16.msra.mxu0 0
      %857 = vmatprep.subr.bf16.mxu0 0
      %858 = vmatpush1.bf16.msra.mxu0 0
      %859 = vmatprep.subr.bf16.mxu0 0
      %860 = vmatpush1.bf16.msra.mxu0 0
      %861 = vmatprep.subr.bf16.mxu0 0
      %862 = vmatpush1.bf16.msra.mxu0 0
      %863 = vmatprep.subr.bf16.mxu0 0
      %864 = vmatpush1.bf16.msra.mxu0 0
      %865 = vmatprep.subr.bf16.mxu0 0
      %866 = vmatpush1.bf16.msra.mxu0 0
      %867 = vmatprep.subr.bf16.mxu0 0
      %868 = vmatpush1.bf16.msra.mxu0 0
      %869 = vmatprep.subr.bf16.mxu0 0
      %870 = vmatpush1.bf16.msra.mxu0 0
      %871 = vmatprep.subr.bf16.mxu0 0
      %872 = vmatpush1.bf16.msra.mxu0 0
      %873 = vmatprep.subr.bf16.mxu0 0
      %874 = vmatpush1.bf16.msra.mxu0 0
      %875 = vmatprep.subr.bf16.mxu0 0
      %876 = vmatpush1.bf16.msra.mxu0 0
      %877 = vmatprep.subr.bf16.mxu0 0
      %878 = vmatpush1.bf16.msra.mxu0 0
      %879 = vmatprep.subr.bf16.mxu0 0
      %880 = vmatpush1.bf16.msra.mxu0 0
      %881 = vmatprep.subr.bf16.mxu0 0
      %882 = vmatpush1.bf16.msra.mxu0 0
      %883 = vmatprep.mubr.bf16.mxu0 0
      %884 = vmatmul.mubr.bf16.gmra.mrb[0].mxu0 %v849
      %v885 = vpop.f32.mrb[0].mxu0
      %v886 = vadd.f32 %v834, %v885
      %v887 = vpop.f32.mrb[0].mxu0
      %v888 = vpop.f32.mrb[0].mxu0
      %v889 = vpop.f32.mrb[0].mxu0
      %890 = vdwg.mxu0
      %v891 = vmul.f32 %v886, 0.5
      %v892 = vtanh.pop %v891
      %v893 = vadd.f32 %v892, 1.0
      %v894 = vmul.f32 %v893, 0.5
      %v895 = vadd.f32 %v671, %v894
      %v896 = vmul.f32 %v895, 0.5
      %vm897 = vcmask 7168
      %898 = vst.msk [vmem:[%s439] sm:$0xff] %vm897, %v896
      %p899 = scmp.lt.s32.totalorder %s28, 1
      %s900 = scalar_select %p899, %s28, 1
      %s901 = smul.addr %s900, 8
      %s902 = scalar_lea.vmem %s13, %s901
      // Predicated region
      $region73: #{tpu_custom_call.1} parent=71 // pred_check
        %p903 = pneg %p324
      $region74: #{tpu_custom_call.1} parent=71 // pred_check_branch
        %905 = sbr.rel (%p903) target = $region76
      $region75: #{tpu_custom_call.1} parent=71 // pred_region
        _
      $region76: #{tpu_custom_call.1} parent=71 // pred_fallthru
        _
    $region72: #{tpu_custom_call.1} parent=5 // pred_fallthru
      _
    %p906 = scmp.le.s32.totalorder 2, %s23
    // Predicated region
    $region77: #{tpu_custom_call.1} parent=5 // pred_check
      %p907 = pneg %p906
    $region78: #{tpu_custom_call.1} parent=5 // pred_check_branch
      %909 = sbr.rel (%p907) target = $region80
    $region79: #{tpu_custom_call.1} parent=5 // pred_region
      %s910 = ssub.s32 %s23, 2
      // Predicated region
      $region81: #{tpu_custom_call.1} parent=79 // pred_check
        %p911 = pneg %p330
      $region82: #{tpu_custom_call.1} parent=79 // pred_check_branch
        %913 = sbr.rel (%p911) target = $region84
      $region83: #{tpu_custom_call.1} parent=79 // pred_region
        %p914 = scmp.lt.s32.totalorder %s29, 1
        %s915 = scalar_select %p914, %s29, 1
        %s916 = smul.addr %s915, 8
        %s917 = scalar_lea.vmem %s13, %s916
      $region84: #{tpu_custom_call.1} parent=79 // pred_fallthru
        _
    $region80: #{tpu_custom_call.1} parent=5 // pred_fallthru
      _
  $region6: #{tpu_custom_call.1} parent=0 // loop_footer
    %s27 = sadd.s32 1, %s23
  $region7: #{tpu_custom_call.1} parent=0 // loop_footer_branch
    %22 = sbr.rel target = $region3
  $region8: #{tpu_custom_call.1} parent=0 // loop_exit
    _

</llo_original>
